<compile_context>
chip_gen: v7x
topology: tpu7x:2x2x1
jax: 0.10.0
libtpu: 0.0.40
codegen_flags: <defaults>
</compile_context>

<pallas_src>
import math

import jax
import jax.numpy as jnp
from jax.experimental import pallas as pl
from jax.experimental.pallas import tpu as pltpu


_VMEM_LIMIT_BYTES = 48 * 1024 * 1024   # > 16/32 MiB scoped defaults, < v7x 64 MiB physical
_FUSED_VMEM_BUDGET = 40 * 1024 * 1024  # working-set ceiling for the fused path


def _round_up(x, m):
    return ((x + m - 1) // m) * m


# ----------------------------------------------------------------------------
# General tiled matmul: C = A @ B, bf16 MXU inputs, f32 accumulation directly
# into the k-resident output block.
# ----------------------------------------------------------------------------
def _matmul_kernel(a_ref, b_ref, o_ref):
    @pl.when(pl.program_id(2) == 0)
    def _():
        o_ref[...] = jnp.zeros_like(o_ref)

    o_ref[...] += jnp.dot(
        a_ref[...].astype(jnp.bfloat16),
        b_ref[...].astype(jnp.bfloat16),
        preferred_element_type=jnp.float32,
    )


def _matmul_tiles(M, N, K):
    tm = min(512, _round_up(M, 128))
    tn = min(512, _round_up(N, 128))
    # Stream the whole K strip in one step when it is small enough
    # (length-1 reduction axis => no serialized accumulate phase).
    tk = min(1024, _round_up(K, 128))
    # v7x megacore: expose >= 2 parallel blocks when the problem allows it.
    if _round_up(M, tm) // tm == 1 and _round_up(N, tn) // tn == 1 and M > 128:
        tm = _round_up(max(128, _round_up(M, 128) // 2), 128)
    return tm, tn, tk


def pallas_matmul(a, b, *, tm=None, tn=None, tk=None):
    """C = A @ B (f32 result). Handles non tile-aligned shapes via zero-padding."""
    M, K = a.shape
    K2, N = b.shape
    assert K == K2, "inner dimensions must match"

    atm, atn, atk = _matmul_tiles(M, N, K)
    tm = tm or atm
    tn = tn or atn
    tk = tk or atk

    Mp, Np, Kp = _round_up(M, tm), _round_up(N, tn), _round_up(K, tk)
    if (Mp, Kp) != (M, K):
        a = jnp.pad(a, ((0, Mp - M), (0, Kp - K)))
    if (Kp, Np) != (K, N):
        b = jnp.pad(b, ((0, Kp - K), (0, Np - N)))

    out = pl.pallas_call(
        _matmul_kernel,
        out_shape=jax.ShapeDtypeStruct((Mp, Np), jnp.float32),
        grid_spec=pltpu.PrefetchScalarGridSpec(
            num_scalar_prefetch=0,
            grid=(Mp // tm, Np // tn, Kp // tk),
            in_specs=[
                pl.BlockSpec((tm, tk), lambda i, j, k: (i, k)),
                pl.BlockSpec((tk, tn), lambda i, j, k: (k, j)),
            ],
            out_specs=pl.BlockSpec((tm, tn), lambda i, j, k: (i, j)),
        ),
        compiler_params=pltpu.CompilerParams(
            dimension_semantics=("parallel", "parallel", "arbitrary"),
            vmem_limit_bytes=_VMEM_LIMIT_BYTES,
        ),
    )(a, b)

    if (Mp, Np) != (M, N):
        out = out[:M, :N]
    return out


# ----------------------------------------------------------------------------
# Fused GCN kernel: output = (adj @ x) @ W in a single pallas_call.
# The (adj @ x) strip for the current row-tile lives in a VMEM accumulator,
# so the intermediate never touches HBM.
# ----------------------------------------------------------------------------
def _fused_gcn_kernel(adj_ref, x_ref, w_ref, o_ref, acc_ref):
    k = pl.program_id(1)

    @pl.when(k == 0)
    def _():
        acc_ref[...] = jnp.zeros_like(acc_ref)

    acc_ref[...] += jnp.dot(
        adj_ref[...].astype(jnp.bfloat16),
        x_ref[...].astype(jnp.bfloat16),
        preferred_element_type=jnp.float32,
    )

    @pl.when(k == pl.num_programs(1) - 1)
    def _():
        o_ref[...] = jnp.dot(
            acc_ref[...].astype(jnp.bfloat16),
            w_ref[...].astype(jnp.bfloat16),
            preferred_element_type=jnp.float32,
        ).astype(o_ref.dtype)


def _fused_tiles(n):
    tm = min(512, _round_up(n, 128))
    tk = min(512, _round_up(n, 128))
    # Keep at least 2 blocks on the parallel axis when possible (v7x megacore).
    if _round_up(n, tm) // tm == 1 and n > 128:
        tm = _round_up(max(128, _round_up(n, 128) // 2), 128)
    return tm, tk


def _fused_vmem_bytes(tm, tk, fin_p, fout_p):
    # double-buffered adj/x/W/output blocks + f32 accumulator, all f32 in VMEM.
    return 4 * (2 * tm * tk + 2 * tk * fin_p + 2 * fin_p * fout_p
                + tm * fin_p + 2 * tm * fout_p)


def _fused_gcn_forward(x, adj, weight):
    N, f_in = x.shape
    f_out = weight.shape[1]
    tm, tk = _fused_tiles(N)
    fin_p = _round_up(f_in, 128)
    fout_p = _round_up(f_out, 128)
    nm_p = _round_up(N, tm)
    nk_p = _round_up(N, tk)

    adj_p = adj if (nm_p, nk_p) == (N, N) else jnp.pad(
        adj, ((0, nm_p - N), (0, nk_p - N)))
    x_p = x if (nk_p, fin_p) == (N, f_in) else jnp.pad(
        x, ((0, nk_p - N), (0, fin_p - f_in)))
    w_p = weight if (fin_p, fout_p) == (f_in, f_out) else jnp.pad(
        weight, ((0, fin_p - f_in), (0, fout_p - f_out)))

    out = pl.pallas_call(
        _fused_gcn_kernel,
        out_shape=jax.ShapeDtypeStruct((nm_p, fout_p), jnp.float32),
        grid_spec=pltpu.PrefetchScalarGridSpec(
            num_scalar_prefetch=0,
            grid=(nm_p // tm, nk_p // tk),
            in_specs=[
                pl.BlockSpec((tm, tk), lambda i, k: (i, k)),        # adj tile
                pl.BlockSpec((tk, fin_p), lambda i, k: (k, 0)),     # x strip
                pl.BlockSpec((fin_p, fout_p), lambda i, k: (0, 0)), # full W
            ],
            out_specs=pl.BlockSpec((tm, fout_p), lambda i, k: (i, 0)),
            scratch_shapes=[pltpu.VMEM((tm, fin_p), jnp.float32)],
        ),
        compiler_params=pltpu.CompilerParams(
            dimension_semantics=("parallel", "arbitrary"),
            vmem_limit_bytes=_VMEM_LIMIT_BYTES,
        ),
    )(adj_p, x_p, w_p)

    if (nm_p, fout_p) != (N, f_out):
        out = out[:N, :f_out]
    return out


# ----------------------------------------------------------------------------
# GCN forward dispatcher
# ----------------------------------------------------------------------------
def graph_convolution_forward(x, adj, weight):
    """output = adj @ (x @ weight)   (computed as (adj @ x) @ weight when F_in <= F_out)."""
    N, f_in = x.shape
    f_out = weight.shape[1]

    if f_in <= f_out:
        tm, tk = _fused_tiles(N)
        fin_p = _round_up(f_in, 128)
        fout_p = _round_up(f_out, 128)
        if _fused_vmem_bytes(tm, tk, fin_p, fout_p) <= _FUSED_VMEM_BUDGET:
            return _fused_gcn_forward(x, adj, weight)
        # Re-associated two-pass fallback (still contracts the smaller F_in vs adj).
        tmp = pallas_matmul(adj, x)            # (N, F_in)
        return pallas_matmul(tmp, weight)      # (N, F_out)

    # F_out < F_in: the spec's original order is already the cheaper association.
    support = pallas_matmul(x, weight)         # (N, F_out)
    return pallas_matmul(adj, support)         # (N, F_out)


def xavier_uniform(key, fan_in, fan_out, dtype=jnp.float32):
    bound = math.sqrt(6.0 / (fan_in + fan_out))
    return jax.random.uniform(
        key, (fan_in, fan_out), dtype=dtype, minval=-bound, maxval=bound
    )


if __name__ == "__main__":
    key = jax.random.PRNGKey(0)
    k1, k2, k3, k4, k5, k6 = jax.random.split(key, 6)
    bf = jnp.bfloat16

    # ---- Case 1: F_in <= F_out -> fused (adj @ x) @ W path ----
    N, F_IN, F_OUT = 256, 128, 256
    x = jax.random.normal(k1, (N, F_IN), dtype=jnp.float32)
    adj = jax.random.uniform(k2, (N, N), dtype=jnp.float32)
    weight = xavier_uniform(k3, F_IN, F_OUT)

    out = jax.block_until_ready(graph_convolution_forward(x, adj, weight))
    assert out.shape == (N, F_OUT)

    # bf16-matched reference (inputs quantized to bf16, f32 accumulation),
    # mirroring the kernel's MXU precision.
    tmp_ref = jnp.dot(adj.astype(bf), x.astype(bf), preferred_element_type=jnp.float32)
    ref = jnp.dot(tmp_ref.astype(bf), weight.astype(bf), preferred_element_type=jnp.float32)
    assert jnp.allclose(out, ref, rtol=1e-2, atol=1e-2), "mismatch vs bf16 reference"

    # Loose sanity check against full-f32 math (bf16 input quantization error only).
    ref32 = adj @ (x @ weight)
    assert jnp.max(jnp.abs(out - ref32)) <= 5e-2 * jnp.max(jnp.abs(ref32)) + 1e-3

    # ---- Case 2: F_in > F_out, non tile-aligned N -> padded two-pass path ----
    N2, F_IN2, F_OUT2 = 200, 160, 96
    x2 = jax.random.normal(k4, (N2, F_IN2), dtype=jnp.float32)
    adj2 = jax.random.uniform(k5, (N2, N2), dtype=jnp.float32)
    w2 = xavier_uniform(k6, F_IN2, F_OUT2)

    out2 = jax.block_until_ready(graph_convolution_forward(x2, adj2, w2))
    assert out2.shape == (N2, F_OUT2)

    sup_ref = jnp.dot(x2.astype(bf), w2.astype(bf), preferred_element_type=jnp.float32)
    ref2 = jnp.dot(adj2.astype(bf), sup_ref.astype(bf), preferred_element_type=jnp.float32)
    assert jnp.allclose(out2, ref2, rtol=1e-2, atol=1e-2), "mismatch vs bf16 reference (case 2)"

    print("KERNEL_OK")
</pallas_src>

<mosaic_0001>
module attributes {stable_mosaic.version = 11 : i64} {
  func.func @_fused_gcn_kernel(%arg0: i32, %arg1: i32, %arg2: memref<128x256xf32, #tpu.memory_space<vmem>>, %arg3: memref<256x128xf32, #tpu.memory_space<vmem>>, %arg4: memref<128x256xf32, #tpu.memory_space<vmem>>, %arg5: memref<128x256xf32, #tpu.memory_space<vmem>>, %arg6: memref<128x128xf32, #tpu.memory_space<vmem>>) attributes {dimension_semantics = [#tpu.dimension_semantics<parallel>, #tpu.dimension_semantics<arbitrary>], iteration_bounds = array<i64: 2, 1>, scalar_prefetch = 0 : i64, scratch_operands = 1 : i64, tpu.core_type = #tpu.core_type<tc>, window_params = [{transform_indices = @transform_0, window_bounds = array<i64: 128, 256>}, {transform_indices = @transform_1, window_bounds = array<i64: 256, 128>}, {pipeline_mode = #tpu.pipeline_mode<synchronous>, transform_indices = @transform_2, window_bounds = array<i64: 128, 256>}, {transform_indices = @transform_3, window_bounds = array<i64: 128, 256>}]} {
    %c0_i32 = arith.constant 0 : i32
    %0 = arith.cmpi eq, %arg1, %c0_i32 : i32
    %1 = arith.extui %0 : i1 to i32
    %c0_i32_0 = arith.constant 0 : i32
    %2 = arith.cmpi ne, %1, %c0_i32_0 : i32
    scf.if %2 {
      %cst_10 = arith.constant 0.000000e+00 : f32
      %14 = vector.broadcast %cst_10 : f32 to vector<128x128xf32>
      %c0_11 = arith.constant 0 : index
      %c0_12 = arith.constant 0 : index
      %15 = vector.load %arg6[%c0_11, %c0_12] : memref<128x128xf32, #tpu.memory_space<vmem>>, vector<128x128xf32>
      tpu.vector_store %arg6[%c0_11, %c0_12], %14 {strides = array<i32>} : memref<128x128xf32, #tpu.memory_space<vmem>>, vector<128x128xf32>,
    } else {
    }
    %c0 = arith.constant 0 : index
    %c0_1 = arith.constant 0 : index
    %3 = vector.load %arg6[%c0, %c0_1] : memref<128x128xf32, #tpu.memory_space<vmem>>, vector<128x128xf32>
    %c0_2 = arith.constant 0 : index
    %c0_3 = arith.constant 0 : index
    %4 = vector.load %arg2[%c0_2, %c0_3] : memref<128x256xf32, #tpu.memory_space<vmem>>, vector<128x256xf32>
    %5 = arith.truncf %4 : vector<128x256xf32> to vector<128x256xbf16>
    %c0_4 = arith.constant 0 : index
    %c0_5 = arith.constant 0 : index
    %6 = vector.load %arg3[%c0_4, %c0_5] : memref<256x128xf32, #tpu.memory_space<vmem>>, vector<256x128xf32>
    %7 = arith.truncf %6 : vector<256x128xf32> to vector<256x128xbf16>
    %cst = arith.constant dense<0.000000e+00> : vector<128x128xf32>
    %8 = tpu.matmul %5, %7, %cst {dimension_numbers = #tpu.dot_dimension_numbers<[1], [0], [0], [1], [0, 0, 1, 1], [], []>} : vector<128x256xbf16>, vector<256x128xbf16>, vector<128x128xf32> -> vector<128x128xf32>
    %9 = arith.addf %3, %8 : vector<128x128xf32>
    %c0_6 = arith.constant 0 : index
    %c0_7 = arith.constant 0 : index
    %10 = vector.load %arg6[%c0_6, %c0_7] : memref<128x128xf32, #tpu.memory_space<vmem>>, vector<128x128xf32>
    tpu.vector_store %arg6[%c0_6, %c0_7], %9 {strides = array<i32>} : memref<128x128xf32, #tpu.memory_space<vmem>>, vector<128x128xf32>,
    %c0_i32_8 = arith.constant 0 : i32
    %11 = arith.cmpi eq, %arg1, %c0_i32_8 : i32
    %12 = arith.extui %11 : i1 to i32
    %c0_i32_9 = arith.constant 0 : i32
    %13 = arith.cmpi ne, %12, %c0_i32_9 : i32
    scf.if %13 {
      %c0_10 = arith.constant 0 : index
      %c0_11 = arith.constant 0 : index
      %14 = vector.load %arg6[%c0_10, %c0_11] : memref<128x128xf32, #tpu.memory_space<vmem>>, vector<128x128xf32>
      %15 = arith.truncf %14 : vector<128x128xf32> to vector<128x128xbf16>
      %c0_12 = arith.constant 0 : index
      %c0_13 = arith.constant 0 : index
      %16 = vector.load %arg4[%c0_12, %c0_13] : memref<128x256xf32, #tpu.memory_space<vmem>>, vector<128x256xf32>
      %17 = arith.truncf %16 : vector<128x256xf32> to vector<128x256xbf16>
      %cst_14 = arith.constant dense<0.000000e+00> : vector<128x256xf32>
      %18 = tpu.matmul %15, %17, %cst_14 {dimension_numbers = #tpu.dot_dimension_numbers<[1], [0], [0], [1], [0, 0, 1, 1], [], []>} : vector<128x128xbf16>, vector<128x256xbf16>, vector<128x256xf32> -> vector<128x256xf32>
      %c0_15 = arith.constant 0 : index
      %c0_16 = arith.constant 0 : index
      %19 = vector.load %arg5[%c0_15, %c0_16] : memref<128x256xf32, #tpu.memory_space<vmem>>, vector<128x256xf32>
      tpu.vector_store %arg5[%c0_15, %c0_16], %18 {strides = array<i32>} : memref<128x256xf32, #tpu.memory_space<vmem>>, vector<128x256xf32>,
    } else {
    }
    return
  }
  func.func @transform_0(%arg0: i32, %arg1: i32) -> (i32, i32) {
    %c0_i32 = arith.constant 0 : i32
    return %arg0, %arg1 : i32, i32
  }
  func.func @transform_1(%arg0: i32, %arg1: i32) -> (i32, i32) {
    %c0_i32 = arith.constant 0 : i32
    %c0_i32_0 = arith.constant 0 : i32
    return %arg1, %c0_i32 : i32, i32
  }
  func.func @transform_2(%arg0: i32, %arg1: i32) -> (i32, i32) {
    %c0_i32 = arith.constant 0 : i32
    %c0_i32_0 = arith.constant 0 : i32
    %c0_i32_1 = arith.constant 0 : i32
    return %c0_i32, %c0_i32_0 : i32, i32
  }
  func.func @transform_3(%arg0: i32, %arg1: i32) -> (i32, i32) {
    %c0_i32 = arith.constant 0 : i32
    %c0_i32_0 = arith.constant 0 : i32
    return %arg0, %c0_i32 : i32, i32
  }
}

</mosaic_0001>

<llo_original>
// kernel: tpu_custom_call.1
$region0: #{tpu_custom_call.1}
  #allocation0 [shape = 'u32[]', space=smem, size = 0x4, offset = 0x4, fixed_abs, tag = 'smem constant byte address 0x4 - core index']
  #allocation1 [shape = 'u32[144,128]{1,0:T(1,128)}', space=vmem, size = 0x12000, scoped, tag = 'internal scratch']
  #allocation2 [shape = 'f32[128,128]{1,0:T(8,128)}', space=vmem, size = 0x10000, scoped, tag = 'scratch operand']
  %s0 = inlined_call_operand.hbm [shape: f32[256,256], index: 0, kind: input, shape index: {}]
  %s1 = inlined_call_operand.hbm [shape: f32[256,128], index: 1, kind: input, shape index: {}]
  %s2 = inlined_call_operand.hbm [shape: f32[128,256], index: 2, kind: input, shape index: {}]
  %s3 = inlined_call_operand.hbm [shape: f32[256,256], index: 3, kind: output, shape index: {}]
  %s4 = sld [smem:[#allocation0]]
  $region65: #{tpu_custom_call.1} parent=0
    _
  %s6 = ssub.s32 1, %s4
  %s7 = scalar_select 0, %s6, %s4
  $region1: #{tpu_custom_call.1} parent=0
    #allocation3 [shape = 'u8[262144]{0}', space=vmem, size = 0x40000, scoped, tag = 'input window, operand 0']
    #allocation4 [shape = 's32[2]{0}', space=sflag, size = 0x8, scoped, tag = 'scoped memory for tpu_custom_call.1']
    #allocation5 [shape = 's32[2]{0}', space=sflag, size = 0x8, scoped, tag = 'scoped memory for tpu_custom_call.1']
    #allocation6 [shape = 'u8[131072]{0}', space=vmem, size = 0x20000, scoped, tag = 'input window, operand 1, single buffered']
    #allocation7 [shape = 's32[1]{0}', space=sflag, size = 0x4, scoped, tag = 'scoped memory for tpu_custom_call.1']
    #allocation8 [shape = 'u8[131072]{0}', space=vmem, size = 0x20000, scoped, tag = 'input window, operand 2, single buffered']
    #allocation9 [shape = 'u8[262144]{0}', space=vmem, size = 0x40000, scoped, tag = 'output window, operand 0']
    %8 = vsyncpa [#allocation4], 0
    %s9 = scalar_lea.sflag [#allocation4], 1
    %10 = vsyncpa %s9, 0
    %11 = vsyncpa [#allocation7], 0
    %12 = vsyncpa [#allocation5], 0
    %s13 = scalar_lea.sflag [#allocation5], 1
    %14 = vsyncpa %s13, 0
    loop: start=0, step=1, limit=4
    $region2: #{tpu_custom_call.1} parent=1 // loop_pre_header
      _
    $region3: #{tpu_custom_call.1} parent=1 // loop_header
      %s16 = sphi 0, %s20
      %p17 = scmp.ge.s32.totalorder %s16, 4
      %s23 = sphi 0, %s35
      %s24 = sphi 0, %s31
      %s25 = sphi 0, %s23
      %s26 = sphi 0, %s24
      %s27 = sphi 0, %s25
      %s28 = sphi 0, %s26
      %s40 = sphi 0, %s42
      %s43 = sphi 0, %s40
      %s44 = sphi 0, %s43
      %s60 = sphi 0, %s44
      %s66 = sphi 0, %s68
      %s69 = sphi 0, %s66
      %s70 = sphi 0, %s69
      %s86 = sphi 0, %s70
      %s90 = sphi 0, %s90
      %s92 = sphi 0, %s90
      %s93 = sphi 0, %s92
      %s107 = sphi 0, %s93
      %s113 = sphi 0, %s115
      %s116 = sphi 0, %s113
      %s117 = sphi 0, %s116
      %s133 = sphi 0, %s117
    $region4: #{tpu_custom_call.1} parent=1 // loop_header_branch
      %19 = sbr.rel (%p17) target = $region8
    $region5: #{tpu_custom_call.1} parent=1 // loop_body
      %s21 = ssub.s32 %s16, 1
      %s22 = ssub.s32 %s16, 2
      %s29 = sadd.s32 1, %s24
      %p30 = scmp.ge.s32.totalorder %s29, 1
      %s31 = scalar_select %p30, 0, %s29
      %s32 = sadd.s32 1, %s23
      %s33 = scalar_select %p30, %s32, %s23
      %p34 = scmp.ge.s32.totalorder %s33, 2
      %s35 = scalar_select %p34, 0, %s33
      %s36 = ssub.s32 %s23, %s35
      %s37 = ssub.s32 %s24, %s31
      %s38 = sor.u32 %s36, %s37
      %p39 = scmp.eq.s32.totalorder %s38, 0
      %s41 = sadd.s32 %s40, 1
      %s42 = scalar_select %p39, %s40, %s41
      %p45 = pneg %p39
      %p46 = scmp.eq.s32.totalorder %s16, 1
      %p47 = por %p45, %p46
      %p48 = scmp.ne.s32.totalorder %s40, %s43
      %p49 = scmp.eq.s32.totalorder %s16, 0
      %p50 = por %p48, %p49
      %p51 = scmp.ne.s32.totalorder %s40, %s43
      %p52 = scmp.eq.s32.totalorder %s21, 1
      %p53 = por %p51, %p52
      %p54 = scmp.ne.s32.totalorder %s43, %s44
      %p55 = scmp.eq.s32.totalorder %s21, 0
      %p56 = por %p54, %p55
      %p57 = scmp.ne.s32.totalorder %s43, %s44
      %p58 = scmp.eq.s32.totalorder %s22, 1
      %p59 = por %p57, %p58
      %p61 = scmp.ne.s32.totalorder %s44, %s60
      %p62 = scmp.eq.s32.totalorder %s22, 0
      %p63 = por %p61, %p62
      %s64 = ssub.s32 %s24, %s31
      %p65 = scmp.eq.s32.totalorder %s64, 0
      %s67 = sadd.s32 %s66, 1
      %s68 = scalar_select %p65, %s66, %s67
      %p71 = pneg %p65
      %p72 = scmp.eq.s32.totalorder %s16, 1
      %p73 = por %p71, %p72
      %p74 = scmp.ne.s32.totalorder %s66, %s69
      %p75 = scmp.eq.s32.totalorder %s16, 0
      %p76 = por %p74, %p75
      %p77 = scmp.ne.s32.totalorder %s66, %s69
      %p78 = scmp.eq.s32.totalorder %s21, 1
      %p79 = por %p77, %p78
      %p80 = scmp.ne.s32.totalorder %s69, %s70
      %p81 = scmp.eq.s32.totalorder %s21, 0
      %p82 = por %p80, %p81
      %p83 = scmp.ne.s32.totalorder %s69, %s70
      %p84 = scmp.eq.s32.totalorder %s22, 1
      %p85 = por %p83, %p84
      %p87 = scmp.ne.s32.totalorder %s70, %s86
      %p88 = scmp.eq.s32.totalorder %s22, 0
      %p89 = por %p87, %p88
      %s91 = sadd.s32 %s90, 1
      %p94 = scmp.eq.s32.totalorder %s16, 1
      %p95 = scmp.ne.s32.totalorder %s90, %s92
      %p96 = scmp.eq.s32.totalorder %s16, 0
      %p97 = por %p95, %p96
      %p98 = scmp.ne.s32.totalorder %s90, %s92
      %p99 = scmp.eq.s32.totalorder %s21, 1
      %p100 = por %p98, %p99
      %p101 = scmp.ne.s32.totalorder %s92, %s93
      %p102 = scmp.eq.s32.totalorder %s21, 0
      %p103 = por %p101, %p102
      %p104 = scmp.ne.s32.totalorder %s92, %s93
      %p105 = scmp.eq.s32.totalorder %s22, 1
      %p106 = por %p104, %p105
      %p108 = scmp.ne.s32.totalorder %s93, %s107
      %p109 = scmp.eq.s32.totalorder %s22, 0
      %p110 = por %p108, %p109
      %s111 = ssub.s32 %s23, %s35
      %p112 = scmp.eq.s32.totalorder %s111, 0
      %s114 = sadd.s32 %s113, 1
      %s115 = scalar_select %p112, %s113, %s114
      %p118 = pneg %p112
      %p119 = scmp.eq.s32.totalorder %s16, 1
      %p120 = por %p118, %p119
      %p121 = scmp.ne.s32.totalorder %s113, %s116
      %p122 = scmp.eq.s32.totalorder %s16, 0
      %p123 = por %p121, %p122
      %p124 = scmp.ne.s32.totalorder %s113, %s116
      %p125 = scmp.eq.s32.totalorder %s21, 1
      %p126 = por %p124, %p125
      %p127 = scmp.ne.s32.totalorder %s116, %s117
      %p128 = scmp.eq.s32.totalorder %s21, 0
      %p129 = por %p127, %p128
      %p130 = scmp.ne.s32.totalorder %s116, %s117
      %p131 = scmp.eq.s32.totalorder %s22, 1
      %p132 = por %p130, %p131
      %p134 = scmp.ne.s32.totalorder %s117, %s133
      %p135 = scmp.eq.s32.totalorder %s22, 0
      %p136 = por %p134, %p135
      %p137 = scmp.le.s32.totalorder 1, %s16
      %p138 = scmp.lt.s32.totalorder %s16, 3
      %p139 = pnand %p137, %p138
      %p140 = pneg %p139
      // Predicated region
      $region9: #{tpu_custom_call.1} parent=5 // pred_check
        _
      $region10: #{tpu_custom_call.1} parent=5 // pred_check_branch
        %142 = sbr.rel (%p139) target = $region12
      $region11: #{tpu_custom_call.1} parent=5 // pred_region
        %s143 = ssub.s32 %s16, 1
        // Predicated region
        $region13: #{tpu_custom_call.1} parent=11 // pred_check
          %p144 = pneg %p82
        $region14: #{tpu_custom_call.1} parent=11 // pred_check_branch
          %146 = sbr.rel (%p144) target = $region16
        $region15: #{tpu_custom_call.1} parent=11 // pred_region
          %s147 = smul.u32 32, %s26
          %s149 = ssub.s32 4096, 4096
          %150 = vsyncadd [#allocation7], %s149
          %s151 = smul.addr %s147, 128
          %s152 = scalar_lea.hbm %s1, %s151
          %s153 = sshll.u32 [#allocation6], 4
          %s154 = int_to_ptr.vmem [resolvable:$true] %s153
          %159 = dma.hbm_to_vmem [thread:$0]  %s152, 4096, %s154, [#allocation7], 128, 128, 8
        $region16: #{tpu_custom_call.1} parent=11 // pred_fallthru
          _
        // Predicated region
        $region17: #{tpu_custom_call.1} parent=11 // pred_check
          %p160 = pneg %p103
        $region18: #{tpu_custom_call.1} parent=11 // pred_check_branch
          %162 = sbr.rel (%p160) target = $region20
        $region19: #{tpu_custom_call.1} parent=11 // pred_region
          %s164 = ssub.s32 4096, 4096
          %165 = vsyncadd [#allocation7], %s164
          %s166 = sshll.u32 [#allocation8], 4
          %s167 = int_to_ptr.vmem [resolvable:$true] %s166
          %172 = dma.hbm_to_vmem [thread:$0]  %s2, 4096, %s167, [#allocation7], 256, 256, 16
        $region20: #{tpu_custom_call.1} parent=11 // pred_fallthru
          _
      $region12: #{tpu_custom_call.1} parent=5 // pred_fallthru
        _
      %p173 = scmp.lt.s32.totalorder %s16, 2
      // Predicated region
      $region21: #{tpu_custom_call.1} parent=5 // pred_check
        %p174 = pneg %p173
      $region22: #{tpu_custom_call.1} parent=5 // pred_check_branch
        %176 = sbr.rel (%p174) target = $region24
      $region23: #{tpu_custom_call.1} parent=5 // pred_region
        // Predicated region
        $region25: #{tpu_custom_call.1} parent=23 // pred_check
          %p177 = pneg %p50
        $region26: #{tpu_custom_call.1} parent=23 // pred_check_branch
          %179 = sbr.rel (%p177) target = $region28
        $region27: #{tpu_custom_call.1} parent=23 // pred_region
          %s180 = sand.u32 %s40, 1
          %s181 = scalar_lea.sflag [#allocation4], %s180
          %s182 = sand.u32 %s40, 1
          %s183 = smul.addr %s182, 256
          %s184 = scalar_lea.vmem [#allocation3], %s183
          %s185 = smul.u32 16, %s23
          %s186 = smul.u32 2, %s24
          %s188 = ssub.s32 4096, 4096
          %189 = vsyncadd %s181, %s188
          %s190 = smul.addr %s185, 2
          %s191 = sadd.s32 %s186, %s190
          %s192 = smul.addr %s191, 128
          %s193 = scalar_lea.hbm %s0, %s192
          %s194 = sshll.u32 %s184, 4
          %s195 = int_to_ptr.vmem [resolvable:$true] %s194
          %200 = dma.hbm_to_vmem [thread:$0]  %s193, 4096, %s195, %s181, 256, 256, 16
        $region28: #{tpu_custom_call.1} parent=23 // pred_fallthru
          _
      $region24: #{tpu_custom_call.1} parent=5 // pred_fallthru
        _
      %p201 = scmp.le.s32.totalorder 1, %s16
      %p202 = scmp.lt.s32.totalorder %s16, 3
      %p203 = pnand %p201, %p202
      %p204 = pneg %p203
      // Predicated region
      $region29: #{tpu_custom_call.1} parent=5 // pred_check
        _
      $region30: #{tpu_custom_call.1} parent=5 // pred_check_branch
        %206 = sbr.rel (%p203) target = $region32
      $region31: #{tpu_custom_call.1} parent=5 // pred_region
        %s207 = ssub.s32 %s16, 1
        %s208 = sand.u32 %s43, 1
        %s209 = scalar_lea.sflag [#allocation4], %s208
        %s210 = sand.u32 %s43, 1
        %s211 = smul.addr %s210, 256
        %s212 = scalar_lea.vmem [#allocation3], %s211
        // Predicated region
        $region33: #{tpu_custom_call.1} parent=31 // pred_check
          %p213 = pneg %p56
        $region34: #{tpu_custom_call.1} parent=31 // pred_check_branch
          %215 = sbr.rel (%p213) target = $region36
        $region35: #{tpu_custom_call.1} parent=31 // pred_region
          %216 = dma.done %s209, 4096
        $region36: #{tpu_custom_call.1} parent=31 // pred_fallthru
          _
        // Predicated region
        $region37: #{tpu_custom_call.1} parent=31 // pred_check
          %p217 = pneg %p82
        $region38: #{tpu_custom_call.1} parent=31 // pred_check_branch
          %219 = sbr.rel (%p217) target = $region40
        $region39: #{tpu_custom_call.1} parent=31 // pred_region
          %220 = dma.done [#allocation7], 4096
        $region40: #{tpu_custom_call.1} parent=31 // pred_fallthru
          _
        // Predicated region
        $region41: #{tpu_custom_call.1} parent=31 // pred_check
          %p221 = pneg %p103
        $region42: #{tpu_custom_call.1} parent=31 // pred_check_branch
          %223 = sbr.rel (%p221) target = $region44
        $region43: #{tpu_custom_call.1} parent=31 // pred_region
          %224 = dma.done [#allocation7], 4096
        $region44: #{tpu_custom_call.1} parent=31 // pred_fallthru
          _
        %s225 = sand.u32 %s43, 1
        %s226 = scalar_lea.sflag [#allocation4], %s225
        %s227 = sand.u32 %s43, 1
        %s228 = smul.addr %s227, 256
        %s229 = scalar_lea.vmem [#allocation3], %s228
        %p230 = pneg %p56
        %p231 = pneg %p53
        %p232 = pneg %p82
        %p233 = pneg %p79
        %p234 = pneg %p103
        %p235 = pneg %p100
        %p236 = pneg %p129
        %p237 = pneg %p126
        %s238 = sand.u32 %s116, 1
        %s239 = scalar_lea.sflag [#allocation5], %s238
        %s240 = sand.u32 %s116, 1
        %s241 = smul.addr %s240, 256
        %s242 = scalar_lea.vmem [#allocation9], %s241
        %s243 = smul.u32 16, %s25
        %s244 = smul.u32 2, %s26
        %s245 = smul.u32 32, %s26
        %s246 = smul.u32 16, %s25
        %p248 = scmp.eq.s32.totalorder %s26, 0
        // Predicated region
        $region45: #{tpu_custom_call.1} parent=31 // pred_check
          %p249 = pneg %p248
        $region46: #{tpu_custom_call.1} parent=31 // pred_check_branch
          %251 = sbr.rel (%p249) target = $region48
        $region47: #{tpu_custom_call.1} parent=31 // pred_region
          %252 = vst [vmem:[#allocation2] sm:$0xff] 0.0
          %253 = vst [vmem:[#allocation2 + $0x8] sm:$0xff] 0.0
          %254 = vst [vmem:[#allocation2 + $0x10] sm:$0xff] 0.0
          %255 = vst [vmem:[#allocation2 + $0x18] sm:$0xff] 0.0
          %256 = vst [vmem:[#allocation2 + $0x20] sm:$0xff] 0.0
          %257 = vst [vmem:[#allocation2 + $0x28] sm:$0xff] 0.0
          %258 = vst [vmem:[#allocation2 + $0x30] sm:$0xff] 0.0
          %259 = vst [vmem:[#allocation2 + $0x38] sm:$0xff] 0.0
          %260 = vst [vmem:[#allocation2 + $0x40] sm:$0xff] 0.0
          %261 = vst [vmem:[#allocation2 + $0x48] sm:$0xff] 0.0
          %262 = vst [vmem:[#allocation2 + $0x50] sm:$0xff] 0.0
          %263 = vst [vmem:[#allocation2 + $0x58] sm:$0xff] 0.0
          %264 = vst [vmem:[#allocation2 + $0x60] sm:$0xff] 0.0
          %265 = vst [vmem:[#allocation2 + $0x68] sm:$0xff] 0.0
          %266 = vst [vmem:[#allocation2 + $0x70] sm:$0xff] 0.0
          %267 = vst [vmem:[#allocation2 + $0x78] sm:$0xff] 0.0
        $region48: #{tpu_custom_call.1} parent=31 // pred_fallthru
          _
        %v268 = vld [vmem:[#allocation2] sm:$0xff]
        %v269 = vld [vmem:[#allocation2 + $0x8] sm:$0xff]
        %v270 = vld [vmem:[#allocation2 + $0x10] sm:$0xff]
        %v271 = vld [vmem:[#allocation2 + $0x18] sm:$0xff]
        %v272 = vld [vmem:[#allocation2 + $0x20] sm:$0xff]
        %v273 = vld [vmem:[#allocation2 + $0x28] sm:$0xff]
        %v274 = vld [vmem:[#allocation2 + $0x30] sm:$0xff]
        %v275 = vld [vmem:[#allocation2 + $0x38] sm:$0xff]
        %v276 = vld [vmem:[#allocation2 + $0x40] sm:$0xff]
        %v277 = vld [vmem:[#allocation2 + $0x48] sm:$0xff]
        %v278 = vld [vmem:[#allocation2 + $0x50] sm:$0xff]
        %v279 = vld [vmem:[#allocation2 + $0x58] sm:$0xff]
        %v280 = vld [vmem:[#allocation2 + $0x60] sm:$0xff]
        %v281 = vld [vmem:[#allocation2 + $0x68] sm:$0xff]
        %v282 = vld [vmem:[#allocation2 + $0x70] sm:$0xff]
        %v283 = vld [vmem:[#allocation2 + $0x78] sm:$0xff]
        %v284 = vld [vmem:[%s212] sm:$0xff]
        %v285 = vld [vmem:[%s212 + $0x8] sm:$0xff]
        %v286 = vld [vmem:[%s212 + $0x10] sm:$0xff]
        %v287 = vld [vmem:[%s212 + $0x18] sm:$0xff]
        %v288 = vld [vmem:[%s212 + $0x20] sm:$0xff]
        %v289 = vld [vmem:[%s212 + $0x28] sm:$0xff]
        %v290 = vld [vmem:[%s212 + $0x30] sm:$0xff]
        %v291 = vld [vmem:[%s212 + $0x38] sm:$0xff]
        %v292 = vld [vmem:[%s212 + $0x40] sm:$0xff]
        %v293 = vld [vmem:[%s212 + $0x48] sm:$0xff]
        %v294 = vld [vmem:[%s212 + $0x50] sm:$0xff]
        %v295 = vld [vmem:[%s212 + $0x58] sm:$0xff]
        %v296 = vld [vmem:[%s212 + $0x60] sm:$0xff]
        %v297 = vld [vmem:[%s212 + $0x68] sm:$0xff]
        %v298 = vld [vmem:[%s212 + $0x70] sm:$0xff]
        %v299 = vld [vmem:[%s212 + $0x78] sm:$0xff]
        %v300 = vld [vmem:[%s212 + $0x80] sm:$0xff]
        %v301 = vld [vmem:[%s212 + $0x88] sm:$0xff]
        %v302 = vld [vmem:[%s212 + $0x90] sm:$0xff]
        %v303 = vld [vmem:[%s212 + $0x98] sm:$0xff]
        %v304 = vld [vmem:[%s212 + $0xa0] sm:$0xff]
        %v305 = vld [vmem:[%s212 + $0xa8] sm:$0xff]
        %v306 = vld [vmem:[%s212 + $0xb0] sm:$0xff]
        %v307 = vld [vmem:[%s212 + $0xb8] sm:$0xff]
        %v308 = vld [vmem:[%s212 + $0xc0] sm:$0xff]
        %v309 = vld [vmem:[%s212 + $0xc8] sm:$0xff]
        %v310 = vld [vmem:[%s212 + $0xd0] sm:$0xff]
        %v311 = vld [vmem:[%s212 + $0xd8] sm:$0xff]
        %v312 = vld [vmem:[%s212 + $0xe0] sm:$0xff]
        %v313 = vld [vmem:[%s212 + $0xe8] sm:$0xff]
        %v314 = vld [vmem:[%s212 + $0xf0] sm:$0xff]
        %v315 = vld [vmem:[%s212 + $0xf8] sm:$0xff]
        %v316 = vpack.c.bf16 %v286, %v284
        %v317 = vpack.c.bf16 %v287, %v285
        %v318 = vpack.c.bf16 %v290, %v288
        %v319 = vpack.c.bf16 %v291, %v289
        %v320 = vpack.c.bf16 %v294, %v292
        %v321 = vpack.c.bf16 %v295, %v293
        %v322 = vpack.c.bf16 %v298, %v296
        %v323 = vpack.c.bf16 %v299, %v297
        %v324 = vpack.c.bf16 %v302, %v300
        %v325 = vpack.c.bf16 %v303, %v301
        %v326 = vpack.c.bf16 %v306, %v304
        %v327 = vpack.c.bf16 %v307, %v305
        %v328 = vpack.c.bf16 %v310, %v308
        %v329 = vpack.c.bf16 %v311, %v309
        %v330 = vpack.c.bf16 %v314, %v312
        %v331 = vpack.c.bf16 %v315, %v313
        %v332 = vld [vmem:[#allocation6] sm:$0xff]
        %v333 = vld [vmem:[#allocation6 + $0x8] sm:$0xff]
        %v334 = vld [vmem:[#allocation6 + $0x10] sm:$0xff]
        %v335 = vld [vmem:[#allocation6 + $0x18] sm:$0xff]
        %v336 = vld [vmem:[#allocation6 + $0x20] sm:$0xff]
        %v337 = vld [vmem:[#allocation6 + $0x28] sm:$0xff]
        %v338 = vld [vmem:[#allocation6 + $0x30] sm:$0xff]
        %v339 = vld [vmem:[#allocation6 + $0x38] sm:$0xff]
        %v340 = vld [vmem:[#allocation6 + $0x40] sm:$0xff]
        %v341 = vld [vmem:[#allocation6 + $0x48] sm:$0xff]
        %v342 = vld [vmem:[#allocation6 + $0x50] sm:$0xff]
        %v343 = vld [vmem:[#allocation6 + $0x58] sm:$0xff]
        %v344 = vld [vmem:[#allocation6 + $0x60] sm:$0xff]
        %v345 = vld [vmem:[#allocation6 + $0x68] sm:$0xff]
        %v346 = vld [vmem:[#allocation6 + $0x70] sm:$0xff]
        %v347 = vld [vmem:[#allocation6 + $0x78] sm:$0xff]
        %v348 = vld [vmem:[#allocation6 + $0x80] sm:$0xff]
        %v349 = vld [vmem:[#allocation6 + $0x88] sm:$0xff]
        %v350 = vld [vmem:[#allocation6 + $0x90] sm:$0xff]
        %v351 = vld [vmem:[#allocation6 + $0x98] sm:$0xff]
        %v352 = vld [vmem:[#allocation6 + $0xa0] sm:$0xff]
        %v353 = vld [vmem:[#allocation6 + $0xa8] sm:$0xff]
        %v354 = vld [vmem:[#allocation6 + $0xb0] sm:$0xff]
        %v355 = vld [vmem:[#allocation6 + $0xb8] sm:$0xff]
        %v356 = vld [vmem:[#allocation6 + $0xc0] sm:$0xff]
        %v357 = vld [vmem:[#allocation6 + $0xc8] sm:$0xff]
        %v358 = vld [vmem:[#allocation6 + $0xd0] sm:$0xff]
        %v359 = vld [vmem:[#allocation6 + $0xd8] sm:$0xff]
        %v360 = vld [vmem:[#allocation6 + $0xe0] sm:$0xff]
        %v361 = vld [vmem:[#allocation6 + $0xe8] sm:$0xff]
        %v362 = vld [vmem:[#allocation6 + $0xf0] sm:$0xff]
        %v363 = vld [vmem:[#allocation6 + $0xf8] sm:$0xff]
        %v364 = vpack.c.bf16 %v333, %v332
        %v365 = vpack.c.bf16 %v335, %v334
        %v366 = vpack.c.bf16 %v337, %v336
        %v367 = vpack.c.bf16 %v339, %v338
        %v368 = vpack.c.bf16 %v341, %v340
        %v369 = vpack.c.bf16 %v343, %v342
        %v370 = vpack.c.bf16 %v345, %v344
        %v371 = vpack.c.bf16 %v347, %v346
        %v372 = vpack.c.bf16 %v349, %v348
        %v373 = vpack.c.bf16 %v351, %v350
        %v374 = vpack.c.bf16 %v353, %v352
        %v375 = vpack.c.bf16 %v355, %v354
        %v376 = vpack.c.bf16 %v357, %v356
        %v377 = vpack.c.bf16 %v359, %v358
        %v378 = vpack.c.bf16 %v361, %v360
        %v379 = vpack.c.bf16 %v363, %v362
        %380 = vmatprep.subr.bf16.mxu0 0
        %381 = vmatpush1.bf16.msra.mxu0 %v364
        %382 = vmatprep.subr.bf16.mxu0 0
        %383 = vmatpush1.bf16.msra.mxu0 %v365
        %384 = vmatprep.subr.bf16.mxu0 0
        %385 = vmatpush1.bf16.msra.mxu0 %v366
        %386 = vmatprep.subr.bf16.mxu0 0
        %387 = vmatpush1.bf16.msra.mxu0 %v367
        %388 = vmatprep.subr.bf16.mxu0 0
        %389 = vmatpush1.bf16.msra.mxu0 %v368
        %390 = vmatprep.subr.bf16.mxu0 0
        %391 = vmatpush1.bf16.msra.mxu0 %v369
        %392 = vmatprep.subr.bf16.mxu0 0
        %393 = vmatpush1.bf16.msra.mxu0 %v370
        %394 = vmatprep.subr.bf16.mxu0 0
        %395 = vmatpush1.bf16.msra.mxu0 %v371
        %396 = vmatprep.subr.bf16.mxu0 0
        %397 = vmatpush1.bf16.msra.mxu0 %v372
        %398 = vmatprep.subr.bf16.mxu0 0
        %399 = vmatpush1.bf16.msra.mxu0 %v373
        %400 = vmatprep.subr.bf16.mxu0 0
        %401 = vmatpush1.bf16.msra.mxu0 %v374
        %402 = vmatprep.subr.bf16.mxu0 0
        %403 = vmatpush1.bf16.msra.mxu0 %v375
        %404 = vmatprep.subr.bf16.mxu0 0
        %405 = vmatpush1.bf16.msra.mxu0 %v376
        %406 = vmatprep.subr.bf16.mxu0 0
        %407 = vmatpush1.bf16.msra.mxu0 %v377
        %408 = vmatprep.subr.bf16.mxu0 0
        %409 = vmatpush1.bf16.msra.mxu0 %v378
        %410 = vmatprep.subr.bf16.mxu0 0
        %411 = vmatpush1.bf16.msra.mxu0 %v379
        %412 = vmatprep.mubr.bf16.mxu0 %v317
        %413 = vmatmul.mubr.bf16.gmra.mrb[0].mxu0 %v316
        %v414 = vpop.f32.mrb[0].mxu0
        %v415 = vadd.f32 0.0, %v414
        %v416 = vpop.f32.mrb[0].mxu0
        %v417 = vpop.f32.mrb[0].mxu0
        %v418 = vadd.f32 0.0, %v417
        %v419 = vpop.f32.mrb[0].mxu0
        %420 = vmatprep.mubr.bf16.mxu0 %v319
        %421 = vmatmul.mubr.bf16.gmra.mrb[0].mxu0 %v318
        %v422 = vpop.f32.mrb[0].mxu0
        %v423 = vadd.f32 0.0, %v422
        %v424 = vpop.f32.mrb[0].mxu0
        %v425 = vpop.f32.mrb[0].mxu0
        %v426 = vadd.f32 0.0, %v425
        %v427 = vpop.f32.mrb[0].mxu0
        %428 = vmatprep.mubr.bf16.mxu0 %v321
        %429 = vmatmul.mubr.bf16.gmra.mrb[0].mxu0 %v320
        %v430 = vpop.f32.mrb[0].mxu0
        %v431 = vadd.f32 0.0, %v430
        %v432 = vpop.f32.mrb[0].mxu0
        %v433 = vpop.f32.mrb[0].mxu0
        %v434 = vadd.f32 0.0, %v433
        %v435 = vpop.f32.mrb[0].mxu0
        %436 = vmatprep.mubr.bf16.mxu0 %v323
        %437 = vmatmul.mubr.bf16.gmra.mrb[0].mxu0 %v322
        %v438 = vpop.f32.mrb[0].mxu0
        %v439 = vadd.f32 0.0, %v438
        %v440 = vpop.f32.mrb[0].mxu0
        %v441 = vpop.f32.mrb[0].mxu0
        %v442 = vadd.f32 0.0, %v441
        %v443 = vpop.f32.mrb[0].mxu0
        %444 = vmatprep.mubr.bf16.mxu0 %v325
        %445 = vmatmul.mubr.bf16.gmra.mrb[0].mxu0 %v324
        %v446 = vpop.f32.mrb[0].mxu0
        %v447 = vadd.f32 0.0, %v446
        %v448 = vpop.f32.mrb[0].mxu0
        %v449 = vpop.f32.mrb[0].mxu0
        %v450 = vadd.f32 0.0, %v449
        %v451 = vpop.f32.mrb[0].mxu0
        %452 = vmatprep.mubr.bf16.mxu0 %v327
        %453 = vmatmul.mubr.bf16.gmra.mrb[0].mxu0 %v326
        %v454 = vpop.f32.mrb[0].mxu0
        %v455 = vadd.f32 0.0, %v454
        %v456 = vpop.f32.mrb[0].mxu0
        %v457 = vpop.f32.mrb[0].mxu0
        %v458 = vadd.f32 0.0, %v457
        %v459 = vpop.f32.mrb[0].mxu0
        %460 = vmatprep.mubr.bf16.mxu0 %v329
        %461 = vmatmul.mubr.bf16.gmra.mrb[0].mxu0 %v328
        %v462 = vpop.f32.mrb[0].mxu0
        %v463 = vadd.f32 0.0, %v462
        %v464 = vpop.f32.mrb[0].mxu0
        %v465 = vpop.f32.mrb[0].mxu0
        %v466 = vadd.f32 0.0, %v465
        %v467 = vpop.f32.mrb[0].mxu0
        %468 = vmatprep.mubr.bf16.mxu0 %v331
        %469 = vmatmul.mubr.bf16.gmra.mrb[0].mxu0 %v330
        %v470 = vpop.f32.mrb[0].mxu0
        %v471 = vadd.f32 0.0, %v470
        %v472 = vpop.f32.mrb[0].mxu0
        %v473 = vpop.f32.mrb[0].mxu0
        %v474 = vadd.f32 0.0, %v473
        %v475 = vpop.f32.mrb[0].mxu0
        %476 = vdwg.mxu0
        %v477 = vadd.f32 %v268, %v415
        %v478 = vadd.f32 %v269, %v418
        %v479 = vadd.f32 %v270, %v423
        %v480 = vadd.f32 %v271, %v426
        %v481 = vadd.f32 %v272, %v431
        %v482 = vadd.f32 %v273, %v434
        %v483 = vadd.f32 %v274, %v439
        %v484 = vadd.f32 %v275, %v442
        %v485 = vadd.f32 %v276, %v447
        %v486 = vadd.f32 %v277, %v450
        %v487 = vadd.f32 %v278, %v455
        %v488 = vadd.f32 %v279, %v458
        %v489 = vadd.f32 %v280, %v463
        %v490 = vadd.f32 %v281, %v466
        %v491 = vadd.f32 %v282, %v471
        %v492 = vadd.f32 %v283, %v474
        %493 = vst [vmem:[#allocation2] sm:$0xff] %v477
        %494 = vst [vmem:[#allocation2 + $0x8] sm:$0xff] %v478
        %495 = vst [vmem:[#allocation2 + $0x10] sm:$0xff] %v479
        %496 = vst [vmem:[#allocation2 + $0x18] sm:$0xff] %v480
        %497 = vst [vmem:[#allocation2 + $0x20] sm:$0xff] %v481
        %498 = vst [vmem:[#allocation2 + $0x28] sm:$0xff] %v482
        %499 = vst [vmem:[#allocation2 + $0x30] sm:$0xff] %v483
        %500 = vst [vmem:[#allocation2 + $0x38] sm:$0xff] %v484
        %501 = vst [vmem:[#allocation2 + $0x40] sm:$0xff] %v485
        %502 = vst [vmem:[#allocation2 + $0x48] sm:$0xff] %v486
        %503 = vst [vmem:[#allocation2 + $0x50] sm:$0xff] %v487
        %504 = vst [vmem:[#allocation2 + $0x58] sm:$0xff] %v488
        %505 = vst [vmem:[#allocation2 + $0x60] sm:$0xff] %v489
        %506 = vst [vmem:[#allocation2 + $0x68] sm:$0xff] %v490
        %507 = vst [vmem:[#allocation2 + $0x70] sm:$0xff] %v491
        %508 = vst [vmem:[#allocation2 + $0x78] sm:$0xff] %v492
        // Predicated region
        $region49: #{tpu_custom_call.1} parent=31 // pred_check
          %p509 = pneg %p248
        $region50: #{tpu_custom_call.1} parent=31 // pred_check_branch
          %511 = sbr.rel (%p509) target = $region52
        $region51: #{tpu_custom_call.1} parent=31 // pred_region
          %v512 = vld [vmem:[#allocation2] sm:$0xff]
          %v513 = vld [vmem:[#allocation2 + $0x8] sm:$0xff]
          %v514 = vld [vmem:[#allocation2 + $0x10] sm:$0xff]
          %v515 = vld [vmem:[#allocation2 + $0x18] sm:$0xff]
          %v516 = vld [vmem:[#allocation2 + $0x20] sm:$0xff]
          %v517 = vld [vmem:[#allocation2 + $0x28] sm:$0xff]
          %v518 = vld [vmem:[#allocation2 + $0x30] sm:$0xff]
          %v519 = vld [vmem:[#allocation2 + $0x38] sm:$0xff]
          %v520 = vld [vmem:[#allocation2 + $0x40] sm:$0xff]
          %v521 = vld [vmem:[#allocation2 + $0x48] sm:$0xff]
          %v522 = vld [vmem:[#allocation2 + $0x50] sm:$0xff]
          %v523 = vld [vmem:[#allocation2 + $0x58] sm:$0xff]
          %v524 = vld [vmem:[#allocation2 + $0x60] sm:$0xff]
          %v525 = vld [vmem:[#allocation2 + $0x68] sm:$0xff]
          %v526 = vld [vmem:[#allocation2 + $0x70] sm:$0xff]
          %v527 = vld [vmem:[#allocation2 + $0x78] sm:$0xff]
          %v528 = vpack.c.bf16 %v513, %v512
          %v529 = vpack.c.bf16 %v515, %v514
          %v530 = vpack.c.bf16 %v517, %v516
          %v531 = vpack.c.bf16 %v519, %v518
          %v532 = vpack.c.bf16 %v521, %v520
          %v533 = vpack.c.bf16 %v523, %v522
          %v534 = vpack.c.bf16 %v525, %v524
          %v535 = vpack.c.bf16 %v527, %v526
          %v536 = vld [vmem:[#allocation8] sm:$0xff]
          %v537 = vld [vmem:[#allocation8 + $0x8] sm:$0xff]
          %v538 = vld [vmem:[#allocation8 + $0x10] sm:$0xff]
          %v539 = vld [vmem:[#allocation8 + $0x18] sm:$0xff]
          %v540 = vld [vmem:[#allocation8 + $0x20] sm:$0xff]
          %v541 = vld [vmem:[#allocation8 + $0x28] sm:$0xff]
          %v542 = vld [vmem:[#allocation8 + $0x30] sm:$0xff]
          %v543 = vld [vmem:[#allocation8 + $0x38] sm:$0xff]
          %v544 = vld [vmem:[#allocation8 + $0x40] sm:$0xff]
          %v545 = vld [vmem:[#allocation8 + $0x48] sm:$0xff]
          %v546 = vld [vmem:[#allocation8 + $0x50] sm:$0xff]
          %v547 = vld [vmem:[#allocation8 + $0x58] sm:$0xff]
          %v548 = vld [vmem:[#allocation8 + $0x60] sm:$0xff]
          %v549 = vld [vmem:[#allocation8 + $0x68] sm:$0xff]
          %v550 = vld [vmem:[#allocation8 + $0x70] sm:$0xff]
          %v551 = vld [vmem:[#allocation8 + $0x78] sm:$0xff]
          %v552 = vld [vmem:[#allocation8 + $0x80] sm:$0xff]
          %v553 = vld [vmem:[#allocation8 + $0x88] sm:$0xff]
          %v554 = vld [vmem:[#allocation8 + $0x90] sm:$0xff]
          %v555 = vld [vmem:[#allocation8 + $0x98] sm:$0xff]
          %v556 = vld [vmem:[#allocation8 + $0xa0] sm:$0xff]
          %v557 = vld [vmem:[#allocation8 + $0xa8] sm:$0xff]
          %v558 = vld [vmem:[#allocation8 + $0xb0] sm:$0xff]
          %v559 = vld [vmem:[#allocation8 + $0xb8] sm:$0xff]
          %v560 = vld [vmem:[#allocation8 + $0xc0] sm:$0xff]
          %v561 = vld [vmem:[#allocation8 + $0xc8] sm:$0xff]
          %v562 = vld [vmem:[#allocation8 + $0xd0] sm:$0xff]
          %v563 = vld [vmem:[#allocation8 + $0xd8] sm:$0xff]
          %v564 = vld [vmem:[#allocation8 + $0xe0] sm:$0xff]
          %v565 = vld [vmem:[#allocation8 + $0xe8] sm:$0xff]
          %v566 = vld [vmem:[#allocation8 + $0xf0] sm:$0xff]
          %v567 = vld [vmem:[#allocation8 + $0xf8] sm:$0xff]
          %v568 = vpack.c.bf16 %v538, %v536
          %v569 = vpack.c.bf16 %v539, %v537
          %v570 = vpack.c.bf16 %v542, %v540
          %v571 = vpack.c.bf16 %v543, %v541
          %v572 = vpack.c.bf16 %v546, %v544
          %v573 = vpack.c.bf16 %v547, %v545
          %v574 = vpack.c.bf16 %v550, %v548
          %v575 = vpack.c.bf16 %v551, %v549
          %v576 = vpack.c.bf16 %v554, %v552
          %v577 = vpack.c.bf16 %v555, %v553
          %v578 = vpack.c.bf16 %v558, %v556
          %v579 = vpack.c.bf16 %v559, %v557
          %v580 = vpack.c.bf16 %v562, %v560
          %v581 = vpack.c.bf16 %v563, %v561
          %v582 = vpack.c.bf16 %v566, %v564
          %v583 = vpack.c.bf16 %v567, %v565
          %584 = vmatprep.subr.bf16.mxu0 %v569
          %585 = vmatpush1.bf16.msra.mxu0 %v568
          %586 = vmatprep.subr.bf16.mxu0 %v571
          %587 = vmatpush1.bf16.msra.mxu0 %v570
          %588 = vmatprep.subr.bf16.mxu0 %v573
          %589 = vmatpush1.bf16.msra.mxu0 %v572
          %590 = vmatprep.subr.bf16.mxu0 %v575
          %591 = vmatpush1.bf16.msra.mxu0 %v574
          %592 = vmatprep.subr.bf16.mxu0 %v577
          %593 = vmatpush1.bf16.msra.mxu0 %v576
          %594 = vmatprep.subr.bf16.mxu0 %v579
          %595 = vmatpush1.bf16.msra.mxu0 %v578
          %596 = vmatprep.subr.bf16.mxu0 %v581
          %597 = vmatpush1.bf16.msra.mxu0 %v580
          %598 = vmatprep.subr.bf16.mxu0 %v583
          %599 = vmatpush1.bf16.msra.mxu0 %v582
          %600 = vmatprep.subr.bf16.mxu0 0
          %601 = vmatpush1.bf16.msra.mxu0 0
          %602 = vmatprep.subr.bf16.mxu0 0
          %603 = vmatpush1.bf16.msra.mxu0 0
          %604 = vmatprep.subr.bf16.mxu0 0
          %605 = vmatpush1.bf16.msra.mxu0 0
          %606 = vmatprep.subr.bf16.mxu0 0
          %607 = vmatpush1.bf16.msra.mxu0 0
          %608 = vmatprep.subr.bf16.mxu0 0
          %609 = vmatpush1.bf16.msra.mxu0 0
          %610 = vmatprep.subr.bf16.mxu0 0
          %611 = vmatpush1.bf16.msra.mxu0 0
          %612 = vmatprep.subr.bf16.mxu0 0
          %613 = vmatpush1.bf16.msra.mxu0 0
          %614 = vmatprep.subr.bf16.mxu0 0
          %615 = vmatpush1.bf16.msra.mxu0 0
          %616 = vmatprep.mubr.bf16.mxu0 0
          %617 = vmatmul.mubr.bf16.gmra.mrb[0].mxu0 %v528
          %v618 = vpop.f32.mrb[0].mxu0
          %v619 = vadd.f32 0.0, %v618
          %v620 = vpop.f32.mrb[0].mxu0
          %v621 = vadd.f32 0.0, %v620
          %v622 = vpop.f32.mrb[0].mxu0
          %v623 = vadd.f32 0.0, %v622
          %v624 = vpop.f32.mrb[0].mxu0
          %v625 = vadd.f32 0.0, %v624
          %626 = vmatprep.mubr.bf16.mxu0 0
          %627 = vmatmul.mubr.bf16.gmra.mrb[0].mxu0 %v529
          %v628 = vpop.f32.mrb[0].mxu0
          %v629 = vadd.f32 0.0, %v628
          %v630 = vpop.f32.mrb[0].mxu0
          %v631 = vadd.f32 0.0, %v630
          %v632 = vpop.f32.mrb[0].mxu0
          %v633 = vadd.f32 0.0, %v632
          %v634 = vpop.f32.mrb[0].mxu0
          %v635 = vadd.f32 0.0, %v634
          %636 = vmatprep.mubr.bf16.mxu0 0
          %637 = vmatmul.mubr.bf16.gmra.mrb[0].mxu0 %v530
          %v638 = vpop.f32.mrb[0].mxu0
          %v639 = vadd.f32 0.0, %v638
          %v640 = vpop.f32.mrb[0].mxu0
          %v641 = vadd.f32 0.0, %v640
          %v642 = vpop.f32.mrb[0].mxu0
          %v643 = vadd.f32 0.0, %v642
          %v644 = vpop.f32.mrb[0].mxu0
          %v645 = vadd.f32 0.0, %v644
          %646 = vmatprep.mubr.bf16.mxu0 0
          %647 = vmatmul.mubr.bf16.gmra.mrb[0].mxu0 %v531
          %v648 = vpop.f32.mrb[0].mxu0
          %v649 = vadd.f32 0.0, %v648
          %v650 = vpop.f32.mrb[0].mxu0
          %v651 = vadd.f32 0.0, %v650
          %v652 = vpop.f32.mrb[0].mxu0
          %v653 = vadd.f32 0.0, %v652
          %v654 = vpop.f32.mrb[0].mxu0
          %v655 = vadd.f32 0.0, %v654
          %656 = vmatprep.mubr.bf16.mxu0 0
          %657 = vmatmul.mubr.bf16.gmra.mrb[0].mxu0 %v532
          %v658 = vpop.f32.mrb[0].mxu0
          %v659 = vadd.f32 0.0, %v658
          %v660 = vpop.f32.mrb[0].mxu0
          %v661 = vadd.f32 0.0, %v660
          %v662 = vpop.f32.mrb[0].mxu0
          %v663 = vadd.f32 0.0, %v662
          %v664 = vpop.f32.mrb[0].mxu0
          %v665 = vadd.f32 0.0, %v664
          %666 = vmatprep.mubr.bf16.mxu0 0
          %667 = vmatmul.mubr.bf16.gmra.mrb[0].mxu0 %v533
          %v668 = vpop.f32.mrb[0].mxu0
          %v669 = vadd.f32 0.0, %v668
          %v670 = vpop.f32.mrb[0].mxu0
          %v671 = vadd.f32 0.0, %v670
          %v672 = vpop.f32.mrb[0].mxu0
          %v673 = vadd.f32 0.0, %v672
          %v674 = vpop.f32.mrb[0].mxu0
          %v675 = vadd.f32 0.0, %v674
          %676 = vmatprep.mubr.bf16.mxu0 0
          %677 = vmatmul.mubr.bf16.gmra.mrb[0].mxu0 %v534
          %v678 = vpop.f32.mrb[0].mxu0
          %v679 = vadd.f32 0.0, %v678
          %v680 = vpop.f32.mrb[0].mxu0
          %v681 = vadd.f32 0.0, %v680
          %v682 = vpop.f32.mrb[0].mxu0
          %v683 = vadd.f32 0.0, %v682
          %v684 = vpop.f32.mrb[0].mxu0
          %v685 = vadd.f32 0.0, %v684
          %686 = vmatprep.mubr.bf16.mxu0 0
          %687 = vmatmul.mubr.bf16.gmra.mrb[0].mxu0 %v535
          %v688 = vpop.f32.mrb[0].mxu0
          %v689 = vadd.f32 0.0, %v688
          %v690 = vpop.f32.mrb[0].mxu0
          %v691 = vadd.f32 0.0, %v690
          %v692 = vpop.f32.mrb[0].mxu0
          %v693 = vadd.f32 0.0, %v692
          %v694 = vpop.f32.mrb[0].mxu0
          %v695 = vadd.f32 0.0, %v694
          %696 = vdwg.mxu0
          %697 = vst [vmem:[%s242] sm:$0xff] %v619
          %698 = vst [vmem:[%s242 + $0x8] sm:$0xff] %v621
          %699 = vst [vmem:[%s242 + $0x10] sm:$0xff] %v623
          %700 = vst [vmem:[%s242 + $0x18] sm:$0xff] %v625
          %701 = vst [vmem:[%s242 + $0x20] sm:$0xff] %v629
          %702 = vst [vmem:[%s242 + $0x28] sm:$0xff] %v631
          %703 = vst [vmem:[%s242 + $0x30] sm:$0xff] %v633
          %704 = vst [vmem:[%s242 + $0x38] sm:$0xff] %v635
          %705 = vst [vmem:[%s242 + $0x40] sm:$0xff] %v639
          %706 = vst [vmem:[%s242 + $0x48] sm:$0xff] %v641
          %707 = vst [vmem:[%s242 + $0x50] sm:$0xff] %v643
          %708 = vst [vmem:[%s242 + $0x58] sm:$0xff] %v645
          %709 = vst [vmem:[%s242 + $0x60] sm:$0xff] %v649
          %710 = vst [vmem:[%s242 + $0x68] sm:$0xff] %v651
          %711 = vst [vmem:[%s242 + $0x70] sm:$0xff] %v653
          %712 = vst [vmem:[%s242 + $0x78] sm:$0xff] %v655
          %713 = vst [vmem:[%s242 + $0x80] sm:$0xff] %v659
          %714 = vst [vmem:[%s242 + $0x88] sm:$0xff] %v661
          %715 = vst [vmem:[%s242 + $0x90] sm:$0xff] %v663
          %716 = vst [vmem:[%s242 + $0x98] sm:$0xff] %v665
          %717 = vst [vmem:[%s242 + $0xa0] sm:$0xff] %v669
          %718 = vst [vmem:[%s242 + $0xa8] sm:$0xff] %v671
          %719 = vst [vmem:[%s242 + $0xb0] sm:$0xff] %v673
          %720 = vst [vmem:[%s242 + $0xb8] sm:$0xff] %v675
          %721 = vst [vmem:[%s242 + $0xc0] sm:$0xff] %v679
          %722 = vst [vmem:[%s242 + $0xc8] sm:$0xff] %v681
          %723 = vst [vmem:[%s242 + $0xd0] sm:$0xff] %v683
          %724 = vst [vmem:[%s242 + $0xd8] sm:$0xff] %v685
          %725 = vst [vmem:[%s242 + $0xe0] sm:$0xff] %v689
          %726 = vst [vmem:[%s242 + $0xe8] sm:$0xff] %v691
          %727 = vst [vmem:[%s242 + $0xf0] sm:$0xff] %v693
          %728 = vst [vmem:[%s242 + $0xf8] sm:$0xff] %v695
        $region52: #{tpu_custom_call.1} parent=31 // pred_fallthru
          _
        %s729 = sand.u32 %s116, 1
        %s730 = scalar_lea.sflag [#allocation5], %s729
        %s731 = sand.u32 %s116, 1
        %s732 = smul.addr %s731, 256
        %s733 = scalar_lea.vmem [#allocation9], %s732
        // Predicated region
        $region53: #{tpu_custom_call.1} parent=31 // pred_check
          %p734 = pneg %p126
        $region54: #{tpu_custom_call.1} parent=31 // pred_check_branch
          %736 = sbr.rel (%p734) target = $region56
        $region55: #{tpu_custom_call.1} parent=31 // pred_region
          %s737 = smul.u32 16, %s25
          %s739 = ssub.s32 4096, 4096
          %740 = vsyncadd %s730, %s739
          %s741 = smul.addr %s737, 2
          %s742 = smul.addr %s741, 128
          %s743 = scalar_lea.hbm %s3, %s742
          %s744 = sshll.u32 %s733, 4
          %s745 = int_to_ptr.vmem [resolvable:$true] %s744
          %750 = dma.vmem_to_hbm [thread:$0]  %s745, 4096, %s743, %s730, 256, 256, 16
        $region56: #{tpu_custom_call.1} parent=31 // pred_fallthru
          _
      $region32: #{tpu_custom_call.1} parent=5 // pred_fallthru
        _
      %p751 = scmp.le.s32.totalorder 2, %s16
      // Predicated region
      $region57: #{tpu_custom_call.1} parent=5 // pred_check
        %p752 = pneg %p751
      $region58: #{tpu_custom_call.1} parent=5 // pred_check_branch
        %754 = sbr.rel (%p752) target = $region60
      $region59: #{tpu_custom_call.1} parent=5 // pred_region
        %s755 = ssub.s32 %s16, 2
        // Predicated region
        $region61: #{tpu_custom_call.1} parent=59 // pred_check
          %p756 = pneg %p132
        $region62: #{tpu_custom_call.1} parent=59 // pred_check_branch
          %758 = sbr.rel (%p756) target = $region64
        $region63: #{tpu_custom_call.1} parent=59 // pred_region
          %s759 = sand.u32 %s117, 1
          %s760 = scalar_lea.sflag [#allocation5], %s759
          %s761 = sand.u32 %s117, 1
          %s762 = smul.addr %s761, 256
          %s763 = scalar_lea.vmem [#allocation9], %s762
          %764 = dma.done %s760, 4096
        $region64: #{tpu_custom_call.1} parent=59 // pred_fallthru
          _
      $region60: #{tpu_custom_call.1} parent=5 // pred_fallthru
        _
    $region6: #{tpu_custom_call.1} parent=1 // loop_footer
      %s20 = sadd.s32 1, %s16
    $region7: #{tpu_custom_call.1} parent=1 // loop_footer_branch
      %15 = sbr.rel target = $region3
    $region8: #{tpu_custom_call.1} parent=1 // loop_exit
      _
    %765 = vsyncpa [#allocation4], 1
    %s766 = scalar_lea.sflag [#allocation4], 1
    %767 = vsyncpa %s766, 1
    %768 = vsyncpa [#allocation7], 1
    %769 = vsyncpa [#allocation5], 1
    %s770 = scalar_lea.sflag [#allocation5], 1
    %771 = vsyncpa %s770, 1

</llo_original>
